<compile_context>
chip_gen: v5e
topology: v5e:2x2
jax: 0.10.0
libtpu: 0.0.40
codegen_flags: <defaults>
</compile_context>

<pallas_src>
import jax
import jax.numpy as jnp
from jax.experimental import pallas as pl
from jax.experimental.pallas import tpu as pltpu

LANE = 128   # TPU lane width (last dim)
SUB = 8      # f32 sublane tile (second-to-last dim)

# Offsets into the packed parameter vector (PyTorch layout, row-major).
_W1, _B1 = 0, 4           # w1: (4,1) -> 4,  b1: (4,)
_W2, _B2 = 8, 24          # w2: (4,4) -> 16, b2: (4,)
_W3, _B3 = 28, 36         # w3: (2,4) -> 8,  b3: (2,)
_W4, _B4 = 38, 40         # w4: (1,2) -> 2,  b4: (1,)
_NPARAMS = 41


def _mlp_kernel(p_ref, x_ref, o_ref):
    """Dense (TR, 128) activation tile; tiny weights read as SMEM scalars.

    Every layer is an unrolled set of VPU scalar-broadcast FMAs + ReLU
    (no MXU, no cross-lane traffic).
    """
    x = x_ref[...]                                              # (TR, 128)

    # Layer 1: Linear(1, 4) + ReLU
    h1 = [jnp.maximum(p_ref[_W1 + j] * x + p_ref[_B1 + j], 0.0)
          for j in range(4)]

    # Layer 2: Linear(4, 4) + ReLU
    h2 = []
    for j in range(4):
        acc = p_ref[_B2 + j] + p_ref[_W2 + 4 * j] * h1[0]
        for i in range(1, 4):
            acc = acc + p_ref[_W2 + 4 * j + i] * h1[i]
        h2.append(jnp.maximum(acc, 0.0))

    # Layer 3: Linear(4, 2) + ReLU
    h3 = []
    for j in range(2):
        acc = p_ref[_B3 + j] + p_ref[_W3 + 4 * j] * h2[0]
        for i in range(1, 4):
            acc = acc + p_ref[_W3 + 4 * j + i] * h2[i]
        h3.append(jnp.maximum(acc, 0.0))

    # Layer 4: Linear(2, 1) + Sigmoid (exp + exact reciprocal -> EUP path)
    z = p_ref[_B4] + p_ref[_W4 + 0] * h3[0] + p_ref[_W4 + 1] * h3[1]
    o_ref[...] = pl.reciprocal(1.0 + jnp.exp(-z), approx=False)


def _choose_tiling(n_elems, max_tile_rows=2048):
    """Return (rows_padded, tile_rows): rows_padded * LANE >= n_elems,
    tile_rows a multiple of 8, rows_padded a multiple of tile_rows."""
    rows = -(-n_elems // LANE)                 # ceil(n / 128)
    rows = ((rows + SUB - 1) // SUB) * SUB     # multiple of 8 (f32 sublanes)
    if rows <= max_tile_rows:
        if rows >= 1024:
            # Split large-but-single-tile batches into 2 parallel tiles so a
            # 2-TensorCore chip (v7x) can shard the batch axis.
            half = ((rows + 2 * SUB - 1) // (2 * SUB)) * SUB
            return 2 * half, half
        return rows, rows
    tile_rows = max_tile_rows
    rows = ((rows + tile_rows - 1) // tile_rows) * tile_rows
    return rows, tile_rows


def pack_params(params):
    """Flatten PyTorch-layout (out,in) weights / (out,) biases into (41,) f32."""
    (w1, b1), (w2, b2), (w3, b3), (w4, b4) = params
    packed = jnp.concatenate([
        w1.reshape(-1), b1.reshape(-1),
        w2.reshape(-1), b2.reshape(-1),
        w3.reshape(-1), b3.reshape(-1),
        w4.reshape(-1), b4.reshape(-1),
    ]).astype(jnp.float32)
    assert packed.shape == (_NPARAMS,)
    return packed


def discriminator_forward(x, params):
    """x: (B, 1) (or any shape whose flatten is (B, 1)). Returns (B, 1)."""
    B = x.shape[0]
    x_flat = x.reshape(B, -1).astype(jnp.float32)
    assert x_flat.shape[1] == 1, \
        "Flatten() feeding Linear(1, 4) implies a flattened feature size of 1"

    rows, tile_rows = _choose_tiling(B)
    n_pad = rows * LANE
    grid = (rows // tile_rows,)

    # Dense (rows, 128) batch slab; padding lanes are zero (computed then
    # sliced off, so no garbage leaks into the returned output).
    x_slab = jnp.pad(x_flat[:, 0], (0, n_pad - B)).reshape(rows, LANE)

    packed = pack_params(params)

    act_spec = pl.BlockSpec((tile_rows, LANE), lambda i: (i, 0))
    smem_spec = pl.BlockSpec(memory_space=pltpu.MemorySpace.SMEM)

    out_slab = pl.pallas_call(
        _mlp_kernel,
        grid=grid,
        out_shape=jax.ShapeDtypeStruct((rows, LANE), jnp.float32),
        in_specs=[smem_spec, act_spec],
        out_specs=act_spec,
        compiler_params=pltpu.CompilerParams(
            dimension_semantics=("parallel",)),
    )(packed, x_slab)

    return out_slab.reshape(n_pad)[:B].reshape(B, 1)


def init_params(key):
    """PyTorch nn.Linear default init: U(-1/sqrt(in), 1/sqrt(in)) for
    weight (out, in) and bias (out,)."""
    dims = [(1, 4), (4, 4), (4, 2), (2, 1)]  # (in, out)
    params = []
    for (fin, fout) in dims:
        key, kw, kb = jax.random.split(key, 3)
        bound = 1.0 / (fin ** 0.5)
        w = jax.random.uniform(kw, (fout, fin), jnp.float32, -bound, bound)
        b = jax.random.uniform(kb, (fout,), jnp.float32, -bound, bound)
        params.append((w, b))
    return params


def _reference(x, params):
    h = x.reshape(x.shape[0], -1)
    for i, (w, b) in enumerate(params):
        h = h @ w.T + b
        if i < len(params) - 1:
            h = jnp.maximum(h, 0.0)
    return jax.nn.sigmoid(h)


if __name__ == "__main__":
    root = jax.random.PRNGKey(0)
    k_params, k_x = jax.random.split(root)

    params = init_params(k_params)

    # Flattened feature size must be 1 (Flatten -> Linear(1, 4)).
    B = 1000
    x = jax.random.normal(k_x, (B, 1), jnp.float32)

    out = discriminator_forward(x, params)
    out = jax.block_until_ready(out)

    ref = _reference(x, params)
    assert out.shape == (B, 1)
    assert jnp.allclose(out, ref, atol=1e-5, rtol=1e-5)

    print("KERNEL_OK")
</pallas_src>

<mosaic_0001>
module attributes {stable_mosaic.version = 11 : i64} {
  func.func @_mlp_kernel(%arg0: i32, %arg1: memref<41xf32, #tpu.memory_space<smem>>, %arg2: memref<8x128xf32, #tpu.memory_space<vmem>>, %arg3: memref<8x128xf32, #tpu.memory_space<vmem>>) attributes {dimension_semantics = [#tpu.dimension_semantics<parallel>], iteration_bounds = array<i64: 1>, scalar_prefetch = 0 : i64, scratch_operands = 0 : i64, tpu.core_type = #tpu.core_type<tc>, window_params = [{transform_indices = @transform_0, window_bounds = array<i64: 41>}, {transform_indices = @transform_1, window_bounds = array<i64: 8, 128>}, {transform_indices = @transform_2, window_bounds = array<i64: 8, 128>}]} {
    %c0 = arith.constant 0 : index
    %c0_0 = arith.constant 0 : index
    %0 = vector.load %arg2[%c0, %c0_0] : memref<8x128xf32, #tpu.memory_space<vmem>>, vector<8x128xf32>
    %c0_1 = arith.constant 0 : index
    %1 = memref.load %arg1[%c0_1] : memref<41xf32, #tpu.memory_space<smem>>
    %2 = vector.broadcast %1 : f32 to vector<8x128xf32>
    %3 = arith.mulf %2, %0 : vector<8x128xf32>
    %c4 = arith.constant 4 : index
    %4 = memref.load %arg1[%c4] : memref<41xf32, #tpu.memory_space<smem>>
    %5 = vector.broadcast %4 : f32 to vector<8x128xf32>
    %6 = arith.addf %3, %5 : vector<8x128xf32>
    %cst = arith.constant 0.000000e+00 : f32
    %7 = vector.broadcast %cst : f32 to vector<8x128xf32>
    %8 = arith.maximumf %6, %7 : vector<8x128xf32>
    %c1 = arith.constant 1 : index
    %9 = memref.load %arg1[%c1] : memref<41xf32, #tpu.memory_space<smem>>
    %10 = vector.broadcast %9 : f32 to vector<8x128xf32>
    %11 = arith.mulf %10, %0 : vector<8x128xf32>
    %c5 = arith.constant 5 : index
    %12 = memref.load %arg1[%c5] : memref<41xf32, #tpu.memory_space<smem>>
    %13 = vector.broadcast %12 : f32 to vector<8x128xf32>
    %14 = arith.addf %11, %13 : vector<8x128xf32>
    %cst_2 = arith.constant 0.000000e+00 : f32
    %15 = vector.broadcast %cst_2 : f32 to vector<8x128xf32>
    %16 = arith.maximumf %14, %15 : vector<8x128xf32>
    %c2 = arith.constant 2 : index
    %17 = memref.load %arg1[%c2] : memref<41xf32, #tpu.memory_space<smem>>
    %18 = vector.broadcast %17 : f32 to vector<8x128xf32>
    %19 = arith.mulf %18, %0 : vector<8x128xf32>
    %c6 = arith.constant 6 : index
    %20 = memref.load %arg1[%c6] : memref<41xf32, #tpu.memory_space<smem>>
    %21 = vector.broadcast %20 : f32 to vector<8x128xf32>
    %22 = arith.addf %19, %21 : vector<8x128xf32>
    %cst_3 = arith.constant 0.000000e+00 : f32
    %23 = vector.broadcast %cst_3 : f32 to vector<8x128xf32>
    %24 = arith.maximumf %22, %23 : vector<8x128xf32>
    %c3 = arith.constant 3 : index
    %25 = memref.load %arg1[%c3] : memref<41xf32, #tpu.memory_space<smem>>
    %26 = vector.broadcast %25 : f32 to vector<8x128xf32>
    %27 = arith.mulf %26, %0 : vector<8x128xf32>
    %c7 = arith.constant 7 : index
    %28 = memref.load %arg1[%c7] : memref<41xf32, #tpu.memory_space<smem>>
    %29 = vector.broadcast %28 : f32 to vector<8x128xf32>
    %30 = arith.addf %27, %29 : vector<8x128xf32>
    %cst_4 = arith.constant 0.000000e+00 : f32
    %31 = vector.broadcast %cst_4 : f32 to vector<8x128xf32>
    %32 = arith.maximumf %30, %31 : vector<8x128xf32>
    %c24 = arith.constant 24 : index
    %33 = memref.load %arg1[%c24] : memref<41xf32, #tpu.memory_space<smem>>
    %c8 = arith.constant 8 : index
    %34 = memref.load %arg1[%c8] : memref<41xf32, #tpu.memory_space<smem>>
    %35 = vector.broadcast %34 : f32 to vector<8x128xf32>
    %36 = arith.mulf %35, %8 : vector<8x128xf32>
    %37 = vector.broadcast %33 : f32 to vector<8x128xf32>
    %38 = arith.addf %37, %36 : vector<8x128xf32>
    %c9 = arith.constant 9 : index
    %39 = memref.load %arg1[%c9] : memref<41xf32, #tpu.memory_space<smem>>
    %40 = vector.broadcast %39 : f32 to vector<8x128xf32>
    %41 = arith.mulf %40, %16 : vector<8x128xf32>
    %42 = arith.addf %38, %41 : vector<8x128xf32>
    %c10 = arith.constant 10 : index
    %43 = memref.load %arg1[%c10] : memref<41xf32, #tpu.memory_space<smem>>
    %44 = vector.broadcast %43 : f32 to vector<8x128xf32>
    %45 = arith.mulf %44, %24 : vector<8x128xf32>
    %46 = arith.addf %42, %45 : vector<8x128xf32>
    %c11 = arith.constant 11 : index
    %47 = memref.load %arg1[%c11] : memref<41xf32, #tpu.memory_space<smem>>
    %48 = vector.broadcast %47 : f32 to vector<8x128xf32>
    %49 = arith.mulf %48, %32 : vector<8x128xf32>
    %50 = arith.addf %46, %49 : vector<8x128xf32>
    %cst_5 = arith.constant 0.000000e+00 : f32
    %51 = vector.broadcast %cst_5 : f32 to vector<8x128xf32>
    %52 = arith.maximumf %50, %51 : vector<8x128xf32>
    %c25 = arith.constant 25 : index
    %53 = memref.load %arg1[%c25] : memref<41xf32, #tpu.memory_space<smem>>
    %c12 = arith.constant 12 : index
    %54 = memref.load %arg1[%c12] : memref<41xf32, #tpu.memory_space<smem>>
    %55 = vector.broadcast %54 : f32 to vector<8x128xf32>
    %56 = arith.mulf %55, %8 : vector<8x128xf32>
    %57 = vector.broadcast %53 : f32 to vector<8x128xf32>
    %58 = arith.addf %57, %56 : vector<8x128xf32>
    %c13 = arith.constant 13 : index
    %59 = memref.load %arg1[%c13] : memref<41xf32, #tpu.memory_space<smem>>
    %60 = vector.broadcast %59 : f32 to vector<8x128xf32>
    %61 = arith.mulf %60, %16 : vector<8x128xf32>
    %62 = arith.addf %58, %61 : vector<8x128xf32>
    %c14 = arith.constant 14 : index
    %63 = memref.load %arg1[%c14] : memref<41xf32, #tpu.memory_space<smem>>
    %64 = vector.broadcast %63 : f32 to vector<8x128xf32>
    %65 = arith.mulf %64, %24 : vector<8x128xf32>
    %66 = arith.addf %62, %65 : vector<8x128xf32>
    %c15 = arith.constant 15 : index
    %67 = memref.load %arg1[%c15] : memref<41xf32, #tpu.memory_space<smem>>
    %68 = vector.broadcast %67 : f32 to vector<8x128xf32>
    %69 = arith.mulf %68, %32 : vector<8x128xf32>
    %70 = arith.addf %66, %69 : vector<8x128xf32>
    %cst_6 = arith.constant 0.000000e+00 : f32
    %71 = vector.broadcast %cst_6 : f32 to vector<8x128xf32>
    %72 = arith.maximumf %70, %71 : vector<8x128xf32>
    %c26 = arith.constant 26 : index
    %73 = memref.load %arg1[%c26] : memref<41xf32, #tpu.memory_space<smem>>
    %c16 = arith.constant 16 : index
    %74 = memref.load %arg1[%c16] : memref<41xf32, #tpu.memory_space<smem>>
    %75 = vector.broadcast %74 : f32 to vector<8x128xf32>
    %76 = arith.mulf %75, %8 : vector<8x128xf32>
    %77 = vector.broadcast %73 : f32 to vector<8x128xf32>
    %78 = arith.addf %77, %76 : vector<8x128xf32>
    %c17 = arith.constant 17 : index
    %79 = memref.load %arg1[%c17] : memref<41xf32, #tpu.memory_space<smem>>
    %80 = vector.broadcast %79 : f32 to vector<8x128xf32>
    %81 = arith.mulf %80, %16 : vector<8x128xf32>
    %82 = arith.addf %78, %81 : vector<8x128xf32>
    %c18 = arith.constant 18 : index
    %83 = memref.load %arg1[%c18] : memref<41xf32, #tpu.memory_space<smem>>
    %84 = vector.broadcast %83 : f32 to vector<8x128xf32>
    %85 = arith.mulf %84, %24 : vector<8x128xf32>
    %86 = arith.addf %82, %85 : vector<8x128xf32>
    %c19 = arith.constant 19 : index
    %87 = memref.load %arg1[%c19] : memref<41xf32, #tpu.memory_space<smem>>
    %88 = vector.broadcast %87 : f32 to vector<8x128xf32>
    %89 = arith.mulf %88, %32 : vector<8x128xf32>
    %90 = arith.addf %86, %89 : vector<8x128xf32>
    %cst_7 = arith.constant 0.000000e+00 : f32
    %91 = vector.broadcast %cst_7 : f32 to vector<8x128xf32>
    %92 = arith.maximumf %90, %91 : vector<8x128xf32>
    %c27 = arith.constant 27 : index
    %93 = memref.load %arg1[%c27] : memref<41xf32, #tpu.memory_space<smem>>
    %c20 = arith.constant 20 : index
    %94 = memref.load %arg1[%c20] : memref<41xf32, #tpu.memory_space<smem>>
    %95 = vector.broadcast %94 : f32 to vector<8x128xf32>
    %96 = arith.mulf %95, %8 : vector<8x128xf32>
    %97 = vector.broadcast %93 : f32 to vector<8x128xf32>
    %98 = arith.addf %97, %96 : vector<8x128xf32>
    %c21 = arith.constant 21 : index
    %99 = memref.load %arg1[%c21] : memref<41xf32, #tpu.memory_space<smem>>
    %100 = vector.broadcast %99 : f32 to vector<8x128xf32>
    %101 = arith.mulf %100, %16 : vector<8x128xf32>
    %102 = arith.addf %98, %101 : vector<8x128xf32>
    %c22 = arith.constant 22 : index
    %103 = memref.load %arg1[%c22] : memref<41xf32, #tpu.memory_space<smem>>
    %104 = vector.broadcast %103 : f32 to vector<8x128xf32>
    %105 = arith.mulf %104, %24 : vector<8x128xf32>
    %106 = arith.addf %102, %105 : vector<8x128xf32>
    %c23 = arith.constant 23 : index
    %107 = memref.load %arg1[%c23] : memref<41xf32, #tpu.memory_space<smem>>
    %108 = vector.broadcast %107 : f32 to vector<8x128xf32>
    %109 = arith.mulf %108, %32 : vector<8x128xf32>
    %110 = arith.addf %106, %109 : vector<8x128xf32>
    %cst_8 = arith.constant 0.000000e+00 : f32
    %111 = vector.broadcast %cst_8 : f32 to vector<8x128xf32>
    %112 = arith.maximumf %110, %111 : vector<8x128xf32>
    %c36 = arith.constant 36 : index
    %113 = memref.load %arg1[%c36] : memref<41xf32, #tpu.memory_space<smem>>
    %c28 = arith.constant 28 : index
    %114 = memref.load %arg1[%c28] : memref<41xf32, #tpu.memory_space<smem>>
    %115 = vector.broadcast %114 : f32 to vector<8x128xf32>
    %116 = arith.mulf %115, %52 : vector<8x128xf32>
    %117 = vector.broadcast %113 : f32 to vector<8x128xf32>
    %118 = arith.addf %117, %116 : vector<8x128xf32>
    %c29 = arith.constant 29 : index
    %119 = memref.load %arg1[%c29] : memref<41xf32, #tpu.memory_space<smem>>
    %120 = vector.broadcast %119 : f32 to vector<8x128xf32>
    %121 = arith.mulf %120, %72 : vector<8x128xf32>
    %122 = arith.addf %118, %121 : vector<8x128xf32>
    %c30 = arith.constant 30 : index
    %123 = memref.load %arg1[%c30] : memref<41xf32, #tpu.memory_space<smem>>
    %124 = vector.broadcast %123 : f32 to vector<8x128xf32>
    %125 = arith.mulf %124, %92 : vector<8x128xf32>
    %126 = arith.addf %122, %125 : vector<8x128xf32>
    %c31 = arith.constant 31 : index
    %127 = memref.load %arg1[%c31] : memref<41xf32, #tpu.memory_space<smem>>
    %128 = vector.broadcast %127 : f32 to vector<8x128xf32>
    %129 = arith.mulf %128, %112 : vector<8x128xf32>
    %130 = arith.addf %126, %129 : vector<8x128xf32>
    %cst_9 = arith.constant 0.000000e+00 : f32
    %131 = vector.broadcast %cst_9 : f32 to vector<8x128xf32>
    %132 = arith.maximumf %130, %131 : vector<8x128xf32>
    %c37 = arith.constant 37 : index
    %133 = memref.load %arg1[%c37] : memref<41xf32, #tpu.memory_space<smem>>
    %c32 = arith.constant 32 : index
    %134 = memref.load %arg1[%c32] : memref<41xf32, #tpu.memory_space<smem>>
    %135 = vector.broadcast %134 : f32 to vector<8x128xf32>
    %136 = arith.mulf %135, %52 : vector<8x128xf32>
    %137 = vector.broadcast %133 : f32 to vector<8x128xf32>
    %138 = arith.addf %137, %136 : vector<8x128xf32>
    %c33 = arith.constant 33 : index
    %139 = memref.load %arg1[%c33] : memref<41xf32, #tpu.memory_space<smem>>
    %140 = vector.broadcast %139 : f32 to vector<8x128xf32>
    %141 = arith.mulf %140, %72 : vector<8x128xf32>
    %142 = arith.addf %138, %141 : vector<8x128xf32>
    %c34 = arith.constant 34 : index
    %143 = memref.load %arg1[%c34] : memref<41xf32, #tpu.memory_space<smem>>
    %144 = vector.broadcast %143 : f32 to vector<8x128xf32>
    %145 = arith.mulf %144, %92 : vector<8x128xf32>
    %146 = arith.addf %142, %145 : vector<8x128xf32>
    %c35 = arith.constant 35 : index
    %147 = memref.load %arg1[%c35] : memref<41xf32, #tpu.memory_space<smem>>
    %148 = vector.broadcast %147 : f32 to vector<8x128xf32>
    %149 = arith.mulf %148, %112 : vector<8x128xf32>
    %150 = arith.addf %146, %149 : vector<8x128xf32>
    %cst_10 = arith.constant 0.000000e+00 : f32
    %151 = vector.broadcast %cst_10 : f32 to vector<8x128xf32>
    %152 = arith.maximumf %150, %151 : vector<8x128xf32>
    %c40 = arith.constant 40 : index
    %153 = memref.load %arg1[%c40] : memref<41xf32, #tpu.memory_space<smem>>
    %c38 = arith.constant 38 : index
    %154 = memref.load %arg1[%c38] : memref<41xf32, #tpu.memory_space<smem>>
    %155 = vector.broadcast %154 : f32 to vector<8x128xf32>
    %156 = arith.mulf %155, %132 : vector<8x128xf32>
    %157 = vector.broadcast %153 : f32 to vector<8x128xf32>
    %158 = arith.addf %157, %156 : vector<8x128xf32>
    %c39 = arith.constant 39 : index
    %159 = memref.load %arg1[%c39] : memref<41xf32, #tpu.memory_space<smem>>
    %160 = vector.broadcast %159 : f32 to vector<8x128xf32>
    %161 = arith.mulf %160, %152 : vector<8x128xf32>
    %162 = arith.addf %158, %161 : vector<8x128xf32>
    %cst_11 = arith.constant 0.000000e+00 : f32
    %163 = vector.broadcast %cst_11 : f32 to vector<8x128xf32>
    %164 = arith.subf %163, %162 : vector<8x128xf32>
    %165 = math.exp %164 : vector<8x128xf32>
    %cst_12 = arith.constant 1.000000e+00 : f32
    %166 = vector.broadcast %cst_12 : f32 to vector<8x128xf32>
    %167 = arith.addf %166, %165 : vector<8x128xf32>
    %168 = tpu.reciprocal %167 : vector<8x128xf32> -> vector<8x128xf32>
    %c0_13 = arith.constant 0 : index
    %c0_14 = arith.constant 0 : index
    %169 = vector.load %arg3[%c0_13, %c0_14] : memref<8x128xf32, #tpu.memory_space<vmem>>, vector<8x128xf32>
    tpu.vector_store %arg3[%c0_13, %c0_14], %168 {strides = array<i32>} : memref<8x128xf32, #tpu.memory_space<vmem>>, vector<8x128xf32>,
    return
  }
  func.func @transform_0(%arg0: i32) -> i32 {
    %c0_i32 = arith.constant 0 : i32
    %c0_i32_0 = arith.constant 0 : i32
    return %c0_i32 : i32
  }
  func.func @transform_1(%arg0: i32) -> (i32, i32) {
    %c0_i32 = arith.constant 0 : i32
    %c0_i32_0 = arith.constant 0 : i32
    return %arg0, %c0_i32 : i32, i32
  }
  func.func @transform_2(%arg0: i32) -> (i32, i32) {
    %c0_i32 = arith.constant 0 : i32
    %c0_i32_0 = arith.constant 0 : i32
    return %arg0, %c0_i32 : i32, i32
  }
}

</mosaic_0001>

<llo_original>
// kernel: tpu_custom_call.1
$region0: #{tpu_custom_call.1}
  #allocation0 [shape = 'u32[]', space=smem, size = 0x4, offset = 0x4, fixed_abs, tag = 'smem constant byte address 0x4 - core index']
  #allocation1 [shape = 'u32[72,128]{1,0:T(1,128)}', space=vmem, size = 0x9000, scoped, tag = 'internal scratch']
  %s0 = inlined_call_operand.hbm [shape: f32[41], index: 0, kind: input, shape index: {}]
  %s1 = inlined_call_operand.hbm [shape: f32[8,128], index: 1, kind: input, shape index: {}]
  %s2 = inlined_call_operand.hbm [shape: f32[8,128], index: 2, kind: output, shape index: {}]
  %s3 = sld [smem:[#allocation0]]
  $region26: #{tpu_custom_call.1} parent=0
    _
  %s5 = ssub.s32 1, %s3
  %s6 = scalar_select 0, %s5, %s3
  $region1: #{tpu_custom_call.1} parent=0
    #allocation2 [shape = 'u8[512]{0}', space=smem, size = 0x200, scoped, tag = 'input window, operand 0, single buffered']
    #allocation3 [shape = 's32[1]{0}', space=sflag, size = 0x4, scoped, tag = 'scoped memory for tpu_custom_call.1']
    #allocation4 [shape = 's32[1]{0}', space=sflag, size = 0x4, scoped, tag = 'scoped memory for tpu_custom_call.1']
    #allocation5 [shape = 's32[1]{0}', space=sflag, size = 0x4, scoped, tag = 'scoped memory for tpu_custom_call.1']
    #allocation6 [shape = 'u8[4096]{0}', space=vmem, size = 0x1000, scoped, tag = 'input window, operand 1, single buffered']
    #allocation7 [shape = 'u8[4096]{0}', space=vmem, size = 0x1000, scoped, tag = 'output window, operand 0, single buffered']
    %7 = vsyncpa [#allocation5], 0
    %8 = vsyncpa [#allocation3], 0
    %9 = vsyncpa [#allocation4], 0
    // Predicated region
    $region2: #{tpu_custom_call.1} parent=1 // pred_check
      _
    $region3: #{tpu_custom_call.1} parent=1 // pred_check_branch
      %11 = sbr.rel (0) target = $region5
    $region4: #{tpu_custom_call.1} parent=1 // pred_region
      %13 = vsyncadd [#allocation5], 0
      %s15 = sshll.u32 %s0, 4
      %s16 = int_to_ptr.hbm [resolvable:$true] %s15
      %18 = dma.hbm_to_smem %s16, 16, [#allocation2], [#allocation5]
    $region5: #{tpu_custom_call.1} parent=1 // pred_fallthru
      _
    // Predicated region
    $region6: #{tpu_custom_call.1} parent=1 // pred_check
      _
    $region7: #{tpu_custom_call.1} parent=1 // pred_check_branch
      %20 = sbr.rel (0) target = $region9
    $region8: #{tpu_custom_call.1} parent=1 // pred_region
      %22 = vsyncadd [#allocation3], 0
      %s24 = sshll.u32 %s1, 4
      %s25 = int_to_ptr.hbm [resolvable:$true] %s24
      %s26 = sshll.u32 [#allocation6], 4
      %s27 = int_to_ptr.vmem [resolvable:$true] %s26
      %29 = dma.hbm_to_vmem [thread:$0]  %s25, 128, %s27, [#allocation3]
    $region9: #{tpu_custom_call.1} parent=1 // pred_fallthru
      _
    // Predicated region
    $region10: #{tpu_custom_call.1} parent=1 // pred_check
      _
    $region11: #{tpu_custom_call.1} parent=1 // pred_check_branch
      %31 = sbr.rel (0) target = $region13
    $region12: #{tpu_custom_call.1} parent=1 // pred_region
      %33 = dma.done [#allocation5], 16
    $region13: #{tpu_custom_call.1} parent=1 // pred_fallthru
      _
    // Predicated region
    $region14: #{tpu_custom_call.1} parent=1 // pred_check
      _
    $region15: #{tpu_custom_call.1} parent=1 // pred_check_branch
      %35 = sbr.rel (0) target = $region17
    $region16: #{tpu_custom_call.1} parent=1 // pred_region
      %37 = dma.done [#allocation3], 128
    $region17: #{tpu_custom_call.1} parent=1 // pred_fallthru
      _
    %38 = sfence
    %v39 = vld [vmem:[#allocation6] sm:$0xff]
    %s40 = sld [smem:[#allocation2]]
    %v41 = vstv %s40
    %v42 = vmul.f32 %v41, %v39
    %s43 = sld [smem:[#allocation2 + $0x4]]
    %v44 = vstv %s43
    %v45 = vadd.f32 %v42, %v44
    %v46 = vmax.f32 %v45, 0.0
    %s47 = sld [smem:[#allocation2 + $0x1]]
    %v48 = vstv %s47
    %v49 = vmul.f32 %v48, %v39
    %s50 = sld [smem:[#allocation2 + $0x5]]
    %v51 = vstv %s50
    %v52 = vadd.f32 %v49, %v51
    %v53 = vmax.f32 %v52, 0.0
    %s54 = sld [smem:[#allocation2 + $0x2]]
    %v55 = vstv %s54
    %v56 = vmul.f32 %v55, %v39
    %s57 = sld [smem:[#allocation2 + $0x6]]
    %v58 = vstv %s57
    %v59 = vadd.f32 %v56, %v58
    %v60 = vmax.f32 %v59, 0.0
    %s61 = sld [smem:[#allocation2 + $0x3]]
    %v62 = vstv %s61
    %v63 = vmul.f32 %v62, %v39
    %s64 = sld [smem:[#allocation2 + $0x7]]
    %v65 = vstv %s64
    %v66 = vadd.f32 %v63, %v65
    %v67 = vmax.f32 %v66, 0.0
    %s68 = sld [smem:[#allocation2 + $0x18]]
    %s69 = sld [smem:[#allocation2 + $0x8]]
    %v70 = vstv %s69
    %v71 = vmul.f32 %v70, %v46
    %v72 = vstv %s68
    %v73 = vadd.f32 %v72, %v71
    %s74 = sld [smem:[#allocation2 + $0x9]]
    %v75 = vstv %s74
    %v76 = vmul.f32 %v75, %v53
    %v77 = vadd.f32 %v73, %v76
    %s78 = sld [smem:[#allocation2 + $0xa]]
    %v79 = vstv %s78
    %v80 = vmul.f32 %v79, %v60
    %v81 = vadd.f32 %v77, %v80
    %s82 = sld [smem:[#allocation2 + $0xb]]
    %v83 = vstv %s82
    %v84 = vmul.f32 %v83, %v67
    %v85 = vadd.f32 %v81, %v84
    %v86 = vmax.f32 %v85, 0.0
    %s87 = sld [smem:[#allocation2 + $0x19]]
    %s88 = sld [smem:[#allocation2 + $0xc]]
    %v89 = vstv %s88
    %v90 = vmul.f32 %v89, %v46
    %v91 = vstv %s87
    %v92 = vadd.f32 %v91, %v90
    %s93 = sld [smem:[#allocation2 + $0xd]]
    %v94 = vstv %s93
    %v95 = vmul.f32 %v94, %v53
    %v96 = vadd.f32 %v92, %v95
    %s97 = sld [smem:[#allocation2 + $0xe]]
    %v98 = vstv %s97
    %v99 = vmul.f32 %v98, %v60
    %v100 = vadd.f32 %v96, %v99
    %s101 = sld [smem:[#allocation2 + $0xf]]
    %v102 = vstv %s101
    %v103 = vmul.f32 %v102, %v67
    %v104 = vadd.f32 %v100, %v103
    %v105 = vmax.f32 %v104, 0.0
    %s106 = sld [smem:[#allocation2 + $0x1a]]
    %s107 = sld [smem:[#allocation2 + $0x10]]
    %v108 = vstv %s107
    %v109 = vmul.f32 %v108, %v46
    %v110 = vstv %s106
    %v111 = vadd.f32 %v110, %v109
    %s112 = sld [smem:[#allocation2 + $0x11]]
    %v113 = vstv %s112
    %v114 = vmul.f32 %v113, %v53
    %v115 = vadd.f32 %v111, %v114
    %s116 = sld [smem:[#allocation2 + $0x12]]
    %v117 = vstv %s116
    %v118 = vmul.f32 %v117, %v60
    %v119 = vadd.f32 %v115, %v118
    %s120 = sld [smem:[#allocation2 + $0x13]]
    %v121 = vstv %s120
    %v122 = vmul.f32 %v121, %v67
    %v123 = vadd.f32 %v119, %v122
    %v124 = vmax.f32 %v123, 0.0
    %s125 = sld [smem:[#allocation2 + $0x1b]]
    %s126 = sld [smem:[#allocation2 + $0x14]]
    %v127 = vstv %s126
    %v128 = vmul.f32 %v127, %v46
    %v129 = vstv %s125
    %v130 = vadd.f32 %v129, %v128
    %s131 = sld [smem:[#allocation2 + $0x15]]
    %v132 = vstv %s131
    %v133 = vmul.f32 %v132, %v53
    %v134 = vadd.f32 %v130, %v133
    %s135 = sld [smem:[#allocation2 + $0x16]]
    %v136 = vstv %s135
    %v137 = vmul.f32 %v136, %v60
    %v138 = vadd.f32 %v134, %v137
    %s139 = sld [smem:[#allocation2 + $0x17]]
    %v140 = vstv %s139
    %v141 = vmul.f32 %v140, %v67
    %v142 = vadd.f32 %v138, %v141
    %v143 = vmax.f32 %v142, 0.0
    %s144 = sld [smem:[#allocation2 + $0x24]]
    %s145 = sld [smem:[#allocation2 + $0x1c]]
    %v146 = vstv %s145
    %v147 = vmul.f32 %v146, %v86
    %v148 = vstv %s144
    %v149 = vadd.f32 %v148, %v147
    %s150 = sld [smem:[#allocation2 + $0x1d]]
    %v151 = vstv %s150
    %v152 = vmul.f32 %v151, %v105
    %v153 = vadd.f32 %v149, %v152
    %s154 = sld [smem:[#allocation2 + $0x1e]]
    %v155 = vstv %s154
    %v156 = vmul.f32 %v155, %v124
    %v157 = vadd.f32 %v153, %v156
    %s158 = sld [smem:[#allocation2 + $0x1f]]
    %v159 = vstv %s158
    %v160 = vmul.f32 %v159, %v143
    %v161 = vadd.f32 %v157, %v160
    %v162 = vmax.f32 %v161, 0.0
    %s163 = sld [smem:[#allocation2 + $0x25]]
    %s164 = sld [smem:[#allocation2 + $0x20]]
    %v165 = vstv %s164
    %v166 = vmul.f32 %v165, %v86
    %v167 = vstv %s163
    %v168 = vadd.f32 %v167, %v166
    %s169 = sld [smem:[#allocation2 + $0x21]]
    %v170 = vstv %s169
    %v171 = vmul.f32 %v170, %v105
    %v172 = vadd.f32 %v168, %v171
    %s173 = sld [smem:[#allocation2 + $0x22]]
    %v174 = vstv %s173
    %v175 = vmul.f32 %v174, %v124
    %v176 = vadd.f32 %v172, %v175
    %s177 = sld [smem:[#allocation2 + $0x23]]
    %v178 = vstv %s177
    %v179 = vmul.f32 %v178, %v143
    %v180 = vadd.f32 %v176, %v179
    %v181 = vmax.f32 %v180, 0.0
    %s182 = sld [smem:[#allocation2 + $0x28]]
    %s183 = sld [smem:[#allocation2 + $0x26]]
    %v184 = vstv %s183
    %v185 = vmul.f32 %v184, %v162
    %v186 = vstv %s182
    %v187 = vadd.f32 %v186, %v185
    %s188 = sld [smem:[#allocation2 + $0x27]]
    %v189 = vstv %s188
    %v190 = vmul.f32 %v189, %v181
    %v191 = vadd.f32 %v187, %v190
    %v192 = vsub.f32 0.0, %v191
    %v193 = vmul.f32 %v192, 1.442695
    %v194 = vpow.pop %v193
    %v195 = vadd.f32 %v194, 1.0
    %v196 = vrcp.pop %v195
    %v197 = vmul.f32 %v195, %v196
    %v198 = vsub.f32 1.0, %v197
    %v199 = vmul.f32 %v196, %v198
    %v200 = vadd.f32 %v196, %v199
    %vm201 = vweird.f32 %v195
    %vm202 = vweird.f32 %v196
    %vm203 = vmor %vm201, %vm202
    %v204 = vsel %vm203, %v196, %v200
    %v205 = vand.u32 2147483647, %v195
    %vm206 = vcmp.eq.f32.partialorder %v205, 8.507059e+37
    %v207 = vand.u32 %v195, 2147483648
    %v208 = vor.u32 1.1754944e-38, %v207
    %v209 = vsel %vm206, %v208, %v204
    %210 = vst [vmem:[#allocation7] sm:$0xff] %v209
    // Predicated region
    $region18: #{tpu_custom_call.1} parent=1 // pred_check
      _
    $region19: #{tpu_custom_call.1} parent=1 // pred_check_branch
      %212 = sbr.rel (0) target = $region21
    $region20: #{tpu_custom_call.1} parent=1 // pred_region
      %214 = vsyncadd [#allocation4], 0
      %s216 = sshll.u32 [#allocation7], 4
      %s217 = int_to_ptr.vmem [resolvable:$true] %s216
      %s218 = sshll.u32 %s2, 4
      %s219 = int_to_ptr.hbm [resolvable:$true] %s218
      %221 = dma.vmem_to_hbm [thread:$0]  %s217, 128, %s219, [#allocation4]
    $region21: #{tpu_custom_call.1} parent=1 // pred_fallthru
      _
    // Predicated region
    $region22: #{tpu_custom_call.1} parent=1 // pred_check
      _
    $region23: #{tpu_custom_call.1} parent=1 // pred_check_branch
      %223 = sbr.rel (0) target = $region25
    $region24: #{tpu_custom_call.1} parent=1 // pred_region
      %225 = dma.done [#allocation4], 128
    $region25: #{tpu_custom_call.1} parent=1 // pred_fallthru
      _
    %226 = vsyncpa [#allocation3], 1
    %227 = vsyncpa [#allocation4], 1
    %228 = vsyncpa [#allocation5], 1

</llo_original>
